<compile_context>
chip_gen: v7x
topology: tpu7x:2x2x1
jax: 0.10.0
libtpu: 0.0.40
codegen_flags: <defaults>
</compile_context>

<pallas_src>
import jax
import jax.numpy as jnp
from jax.experimental import pallas as pl
from jax.experimental.pallas import tpu as pltpu

LANE = 128
SUBLANE = 8


def _round_up(x: int, m: int) -> int:
    return ((x + m - 1) // m) * m


def _cdiv(a: int, b: int) -> int:
    return (a + b - 1) // b


def mlp_kernel(x_ref, w1_ref, b1_ref, w2_ref, b2_ref, o_ref, h_acc):
    # x: (Bt, tk)      w1: (tk, Hd)   b1: (1, Hd)
    # w2: (Hd, Op)     b2: (1, Op)    o: (Bt, Op)   h_acc: (Bt, Hd) f32 scratch
    k = pl.program_id(1)

    @pl.when(k == 0)
    def _():
        h_acc[...] = jnp.zeros_like(h_acc)

    # Partial hidden = x_k @ w1_k   (contraction over the K block)
    h_acc[...] += jnp.dot(x_ref[...], w1_ref[...],
                          preferred_element_type=jnp.float32)

    @pl.when(k == pl.num_programs(1) - 1)
    def _():
        h = h_acc[...] + b1_ref[...]
        y = jnp.dot(h, w2_ref[...], preferred_element_type=jnp.float32) + b2_ref[...]
        o_ref[...] = y.astype(o_ref.dtype)


def prepare_params(w1, b1, w2, b2, *, k_tile_threshold=16384, k_tile=2048):
    """One-time parameter preprocessing (transpose + pad). NOT per-call."""
    Hd, D = int(w1.shape[0]), int(w1.shape[1])
    O = int(w2.shape[0])
    O_pad = _round_up(O, LANE)

    if D <= k_tile_threshold:
        tk, D_pad = D, D                  # whole D resident, single K step
    else:
        tk = k_tile                       # stream w1/x over K for huge D
        D_pad = _round_up(D, tk)

    w1t = jnp.pad(jnp.asarray(w1, jnp.float32).T, ((0, D_pad - D), (0, 0)))      # (D_pad, Hd)
    b1r = jnp.asarray(b1, jnp.float32).reshape(1, Hd)                             # (1, Hd)
    w2t = jnp.pad(jnp.asarray(w2, jnp.float32).T, ((0, 0), (0, O_pad - O)))       # (Hd, O_pad)
    b2r = jnp.pad(jnp.asarray(b2, jnp.float32).reshape(1, O), ((0, 0), (0, O_pad - O)))
    return dict(w1t=w1t, b1=b1r, w2t=w2t, b2=b2r,
                D=D, D_pad=D_pad, tk=tk, Hd=Hd, O=O, O_pad=O_pad)


def _choose_batch_tiling(B: int, target: int = 256):
    # Small B: single full-dim tile, no padding (full-extent sublane block is legal).
    if B <= target:
        return B, B, 1
    # Large B: near-equal tiles that are multiples of 8 (minimal padding).
    n = _cdiv(B, target)
    b_tile = _round_up(_cdiv(B, n), SUBLANE)
    b_pad = b_tile * n
    return b_pad, b_tile, n


def baseline_vision_model(params, x_nchw):
    """Forward: Flatten -> Linear(D->Hd) -> Linear(Hd->O)."""
    B = int(x_nchw.shape[0])
    D, D_pad, tk = params["D"], params["D_pad"], params["tk"]
    Hd, O, O_pad = params["Hd"], params["O"], params["O_pad"]

    x_flat = x_nchw.reshape(B, -1).astype(jnp.float32)          # nn.Flatten
    assert x_flat.shape[1] == D

    B_pad, B_tile, n_b = _choose_batch_tiling(B)
    if B_pad != B:
        x_flat = jnp.pad(x_flat, ((0, B_pad - B), (0, 0)))
    if D_pad != D:
        x_flat = jnp.pad(x_flat, ((0, 0), (0, D_pad - D)))
    n_k = D_pad // tk

    # VMEM footprint estimate: streamed blocks double-buffered, weights resident.
    est_bytes = 4 * (2 * B_tile * tk          # x blocks
                     + 2 * tk * Hd            # w1^T blocks
                     + 2 * B_tile * O_pad     # out blocks
                     + Hd * O_pad + Hd + O_pad
                     + B_tile * Hd)           # accumulator scratch
    vmem_limit = None
    if est_bytes > (16 << 20):                # raise past v5e's 16 MiB default
        vmem_limit = min(int(est_bytes * 1.5), 100 << 20)

    grid_spec = pltpu.PrefetchScalarGridSpec(
        num_scalar_prefetch=0,
        grid=(n_b, n_k),
        in_specs=[
            pl.BlockSpec((B_tile, tk), lambda i, k: (i, k)),     # x: batch+K streamed
            pl.BlockSpec((tk, Hd),     lambda i, k: (k, 0)),     # w1^T: K streamed
            pl.BlockSpec((1, Hd),      lambda i, k: (0, 0)),     # b1: resident
            pl.BlockSpec((Hd, O_pad),  lambda i, k: (0, 0)),     # w2^T: resident
            pl.BlockSpec((1, O_pad),   lambda i, k: (0, 0)),     # b2: resident
        ],
        out_specs=pl.BlockSpec((B_tile, O_pad), lambda i, k: (i, 0)),
        scratch_shapes=[pltpu.VMEM((B_tile, Hd), jnp.float32)],
    )

    out_p = pl.pallas_call(
        mlp_kernel,
        out_shape=jax.ShapeDtypeStruct((B_pad, O_pad), jnp.float32),
        grid_spec=grid_spec,
        compiler_params=pltpu.CompilerParams(
            dimension_semantics=("parallel", "arbitrary"),
            vmem_limit_bytes=vmem_limit,
        ),
    )(x_flat, params["w1t"], params["b1"], params["w2t"], params["b2"])

    # Slice away only the lane padding of the output (and batch pad if any).
    return out_p[:B, :O]


if __name__ == "__main__":
    # Small shapes consistent with the module: batch=2, channels=4, spatial=16x16
    # => input_shape = 4*16*16 = 1024, hidden_units = 32, output_shape = 10.
    B, C, H, W = 2, 4, 16, 16
    input_shape = C * H * W
    hidden_units = 32
    output_shape = 10

    key = jax.random.PRNGKey(0)
    kx, k1, kb1, k2, kb2 = jax.random.split(key, 5)

    x = jax.random.normal(kx, (B, C, H, W), dtype=jnp.float32)

    # Deterministic parameter init mimicking nn.Linear (uniform +/- 1/sqrt(fan_in)).
    lim1 = 1.0 / (input_shape ** 0.5)
    w1 = jax.random.uniform(k1, (hidden_units, input_shape), jnp.float32, -lim1, lim1)
    b1 = jax.random.uniform(kb1, (hidden_units,), jnp.float32, -lim1, lim1)

    lim2 = 1.0 / (hidden_units ** 0.5)
    w2 = jax.random.uniform(k2, (output_shape, hidden_units), jnp.float32, -lim2, lim2)
    b2 = jax.random.uniform(kb2, (output_shape,), jnp.float32, -lim2, lim2)

    params = prepare_params(w1, b1, w2, b2)   # one-time preprocessing (hoisted)

    out = baseline_vision_model(params, x)
    out = jax.block_until_ready(out)

    # Pure-JAX reference check (Flatten -> Linear -> Linear).
    x_flat = x.reshape(B, -1)
    ref = (x_flat @ w1.T + b1) @ w2.T + b2
    assert out.shape == (B, output_shape)
    assert jnp.allclose(out, ref, atol=1e-5, rtol=1e-5), "mismatch vs reference"

    print("KERNEL_OK")
</pallas_src>

<mosaic_0001>
module attributes {stable_mosaic.version = 11 : i64} {
  func.func @mlp_kernel(%arg0: i32, %arg1: i32, %arg2: memref<2x1024xf32, #tpu.memory_space<vmem>>, %arg3: memref<1024x32xf32, #tpu.memory_space<vmem>>, %arg4: memref<1x32xf32, #tpu.memory_space<vmem>>, %arg5: memref<32x128xf32, #tpu.memory_space<vmem>>, %arg6: memref<1x128xf32, #tpu.memory_space<vmem>>, %arg7: memref<2x128xf32, #tpu.memory_space<vmem>>, %arg8: memref<2x32xf32, #tpu.memory_space<vmem>>) attributes {dimension_semantics = [#tpu.dimension_semantics<parallel>, #tpu.dimension_semantics<arbitrary>], iteration_bounds = array<i64: 1, 1>, scalar_prefetch = 0 : i64, scratch_operands = 1 : i64, tpu.core_type = #tpu.core_type<tc>, window_params = [{transform_indices = @transform_0, window_bounds = array<i64: 2, 1024>}, {transform_indices = @transform_1, window_bounds = array<i64: 1024, 32>}, {pipeline_mode = #tpu.pipeline_mode<synchronous>, transform_indices = @transform_2, window_bounds = array<i64: 1, 32>}, {pipeline_mode = #tpu.pipeline_mode<synchronous>, transform_indices = @transform_3, window_bounds = array<i64: 32, 128>}, {pipeline_mode = #tpu.pipeline_mode<synchronous>, transform_indices = @transform_4, window_bounds = array<i64: 1, 128>}, {transform_indices = @transform_5, window_bounds = array<i64: 2, 128>}]} {
    %c0_i32 = arith.constant 0 : i32
    %0 = arith.cmpi eq, %arg1, %c0_i32 : i32
    %1 = arith.extui %0 : i1 to i32
    %c0_i32_0 = arith.constant 0 : i32
    %2 = arith.cmpi ne, %1, %c0_i32_0 : i32
    scf.if %2 {
      %cst_10 = arith.constant 0.000000e+00 : f32
      %12 = vector.broadcast %cst_10 : f32 to vector<2x32xf32>
      %c0_11 = arith.constant 0 : index
      %c0_12 = arith.constant 0 : index
      %13 = vector.load %arg8[%c0_11, %c0_12] : memref<2x32xf32, #tpu.memory_space<vmem>>, vector<2x32xf32>
      tpu.vector_store %arg8[%c0_11, %c0_12], %12 {strides = array<i32>} : memref<2x32xf32, #tpu.memory_space<vmem>>, vector<2x32xf32>,
    } else {
    }
    %c0 = arith.constant 0 : index
    %c0_1 = arith.constant 0 : index
    %3 = vector.load %arg8[%c0, %c0_1] : memref<2x32xf32, #tpu.memory_space<vmem>>, vector<2x32xf32>
    %c0_2 = arith.constant 0 : index
    %c0_3 = arith.constant 0 : index
    %4 = vector.load %arg2[%c0_2, %c0_3] : memref<2x1024xf32, #tpu.memory_space<vmem>>, vector<2x1024xf32>
    %c0_4 = arith.constant 0 : index
    %c0_5 = arith.constant 0 : index
    %5 = vector.load %arg3[%c0_4, %c0_5] : memref<1024x32xf32, #tpu.memory_space<vmem>>, vector<1024x32xf32>
    %cst = arith.constant dense<0.000000e+00> : vector<2x32xf32>
    %6 = tpu.matmul %4, %5, %cst {dimension_numbers = #tpu.dot_dimension_numbers<[1], [0], [0], [1], [0, 0, 1, 1], [], []>} : vector<2x1024xf32>, vector<1024x32xf32>, vector<2x32xf32> -> vector<2x32xf32>
    %7 = arith.addf %3, %6 : vector<2x32xf32>
    %c0_6 = arith.constant 0 : index
    %c0_7 = arith.constant 0 : index
    %8 = vector.load %arg8[%c0_6, %c0_7] : memref<2x32xf32, #tpu.memory_space<vmem>>, vector<2x32xf32>
    tpu.vector_store %arg8[%c0_6, %c0_7], %7 {strides = array<i32>} : memref<2x32xf32, #tpu.memory_space<vmem>>, vector<2x32xf32>,
    %c0_i32_8 = arith.constant 0 : i32
    %9 = arith.cmpi eq, %arg1, %c0_i32_8 : i32
    %10 = arith.extui %9 : i1 to i32
    %c0_i32_9 = arith.constant 0 : i32
    %11 = arith.cmpi ne, %10, %c0_i32_9 : i32
    scf.if %11 {
      %c0_10 = arith.constant 0 : index
      %c0_11 = arith.constant 0 : index
      %12 = vector.load %arg8[%c0_10, %c0_11] : memref<2x32xf32, #tpu.memory_space<vmem>>, vector<2x32xf32>
      %c0_12 = arith.constant 0 : index
      %c0_13 = arith.constant 0 : index
      %13 = vector.load %arg4[%c0_12, %c0_13] : memref<1x32xf32, #tpu.memory_space<vmem>>, vector<1x32xf32>
      %14 = vector.broadcast %13 : vector<1x32xf32> to vector<2x32xf32>
      %15 = arith.addf %12, %14 : vector<2x32xf32>
      %c0_14 = arith.constant 0 : index
      %c0_15 = arith.constant 0 : index
      %16 = vector.load %arg5[%c0_14, %c0_15] : memref<32x128xf32, #tpu.memory_space<vmem>>, vector<32x128xf32>
      %cst_16 = arith.constant dense<0.000000e+00> : vector<2x128xf32>
      %17 = tpu.matmul %15, %16, %cst_16 {dimension_numbers = #tpu.dot_dimension_numbers<[1], [0], [0], [1], [0, 0, 1, 1], [], []>} : vector<2x32xf32>, vector<32x128xf32>, vector<2x128xf32> -> vector<2x128xf32>
      %c0_17 = arith.constant 0 : index
      %c0_18 = arith.constant 0 : index
      %18 = vector.load %arg6[%c0_17, %c0_18] : memref<1x128xf32, #tpu.memory_space<vmem>>, vector<1x128xf32>
      %19 = vector.broadcast %18 : vector<1x128xf32> to vector<2x128xf32>
      %20 = arith.addf %17, %19 : vector<2x128xf32>
      %c0_19 = arith.constant 0 : index
      %c0_20 = arith.constant 0 : index
      %21 = vector.load %arg7[%c0_19, %c0_20] : memref<2x128xf32, #tpu.memory_space<vmem>>, vector<2x128xf32>
      tpu.vector_store %arg7[%c0_19, %c0_20], %20 {strides = array<i32>} : memref<2x128xf32, #tpu.memory_space<vmem>>, vector<2x128xf32>,
    } else {
    }
    return
  }
  func.func @transform_0(%arg0: i32, %arg1: i32) -> (i32, i32) {
    %c0_i32 = arith.constant 0 : i32
    return %arg0, %arg1 : i32, i32
  }
  func.func @transform_1(%arg0: i32, %arg1: i32) -> (i32, i32) {
    %c0_i32 = arith.constant 0 : i32
    %c0_i32_0 = arith.constant 0 : i32
    return %arg1, %c0_i32 : i32, i32
  }
  func.func @transform_2(%arg0: i32, %arg1: i32) -> (i32, i32) {
    %c0_i32 = arith.constant 0 : i32
    %c0_i32_0 = arith.constant 0 : i32
    %c0_i32_1 = arith.constant 0 : i32
    return %c0_i32, %c0_i32_0 : i32, i32
  }
  func.func @transform_3(%arg0: i32, %arg1: i32) -> (i32, i32) {
    %c0_i32 = arith.constant 0 : i32
    %c0_i32_0 = arith.constant 0 : i32
    %c0_i32_1 = arith.constant 0 : i32
    return %c0_i32, %c0_i32_0 : i32, i32
  }
  func.func @transform_4(%arg0: i32, %arg1: i32) -> (i32, i32) {
    %c0_i32 = arith.constant 0 : i32
    %c0_i32_0 = arith.constant 0 : i32
    %c0_i32_1 = arith.constant 0 : i32
    return %c0_i32, %c0_i32_0 : i32, i32
  }
  func.func @transform_5(%arg0: i32, %arg1: i32) -> (i32, i32) {
    %c0_i32 = arith.constant 0 : i32
    %c0_i32_0 = arith.constant 0 : i32
    return %arg0, %c0_i32 : i32, i32
  }
}

</mosaic_0001>

<llo_original>
// kernel: tpu_custom_call.1
$region0: #{tpu_custom_call.1}
  #allocation0 [shape = 'u32[]', space=smem, size = 0x4, offset = 0x4, fixed_abs, tag = 'smem constant byte address 0x4 - core index']
  #allocation1 [shape = 'u32[144,128]{1,0:T(1,128)}', space=vmem, size = 0x12000, scoped, tag = 'internal scratch']
  #allocation2 [shape = 'f32[2,32]{1,0:T(2,128)}', space=vmem, size = 0x400, scoped, tag = 'scratch operand']
  %s0 = inlined_call_operand.vmem [shape: f32[2,1024], index: 0, kind: input, shape index: {}]
  %s1 = inlined_call_operand.vmem [shape: f32[1024,32], index: 1, kind: input, shape index: {}]
  %s2 = inlined_call_operand.vmem [shape: f32[1,32], index: 2, kind: input, shape index: {}]
  %s3 = inlined_call_operand.vmem [shape: f32[32,128], index: 3, kind: input, shape index: {}]
  %s4 = inlined_call_operand.vmem [shape: f32[1,128], index: 4, kind: input, shape index: {}]
  %s5 = inlined_call_operand.hbm [shape: f32[2,128], index: 5, kind: output, shape index: {}]
  %s6 = sld [smem:[#allocation0]]
  $region38: #{tpu_custom_call.1} parent=0
    _
  %s8 = ssub.s32 1, %s6
  %s9 = scalar_select 0, %s8, %s6
  $region1: #{tpu_custom_call.1} parent=0
    #allocation3 [shape = 'u8[1024]{0}', space=vmem, size = 0x400, scoped, tag = 'output window, operand 0, single buffered']
    #allocation4 [shape = 's32[1]{0}', space=sflag, size = 0x4, scoped, tag = 'scoped memory for tpu_custom_call.1']
    %10 = vsyncpa [#allocation4], 0
    // Predicated region
    $region2: #{tpu_custom_call.1} parent=1 // pred_check
      _
    $region3: #{tpu_custom_call.1} parent=1 // pred_check_branch
      %12 = sbr.rel (0) target = $region5
    $region4: #{tpu_custom_call.1} parent=1 // pred_region
      _
    $region5: #{tpu_custom_call.1} parent=1 // pred_fallthru
      _
    // Predicated region
    $region6: #{tpu_custom_call.1} parent=1 // pred_check
      _
    $region7: #{tpu_custom_call.1} parent=1 // pred_check_branch
      %14 = sbr.rel (0) target = $region9
    $region8: #{tpu_custom_call.1} parent=1 // pred_region
      _
    $region9: #{tpu_custom_call.1} parent=1 // pred_fallthru
      _
    // Predicated region
    $region10: #{tpu_custom_call.1} parent=1 // pred_check
      _
    $region11: #{tpu_custom_call.1} parent=1 // pred_check_branch
      %16 = sbr.rel (0) target = $region13
    $region12: #{tpu_custom_call.1} parent=1 // pred_region
      _
    $region13: #{tpu_custom_call.1} parent=1 // pred_fallthru
      _
    // Predicated region
    $region14: #{tpu_custom_call.1} parent=1 // pred_check
      _
    $region15: #{tpu_custom_call.1} parent=1 // pred_check_branch
      %18 = sbr.rel (0) target = $region17
    $region16: #{tpu_custom_call.1} parent=1 // pred_region
      _
    $region17: #{tpu_custom_call.1} parent=1 // pred_fallthru
      _
    // Predicated region
    $region18: #{tpu_custom_call.1} parent=1 // pred_check
      _
    $region19: #{tpu_custom_call.1} parent=1 // pred_check_branch
      %20 = sbr.rel (0) target = $region21
    $region20: #{tpu_custom_call.1} parent=1 // pred_region
      _
    $region21: #{tpu_custom_call.1} parent=1 // pred_fallthru
      _
    %p21 = scmp.eq.s32.totalorder 0, 0
    // Predicated region
    $region22: #{tpu_custom_call.1} parent=1 // pred_check
      %p22 = pneg %p21
    $region23: #{tpu_custom_call.1} parent=1 // pred_check_branch
      %24 = sbr.rel (%p22) target = $region25
    $region24: #{tpu_custom_call.1} parent=1 // pred_region
      %vm25 = vcmask 254976
      %26 = vst.msk [vmem:[#allocation2] sm:$0x3] %vm25, 0.0
    $region25: #{tpu_custom_call.1} parent=1 // pred_fallthru
      _
    %v27 = vld [vmem:[#allocation2] sm:$0x3]
    %v28 = vld [vmem:[%s0] sm:$0xff]
    %v29 = vld [vmem:[%s0 + $0x8] sm:$0xff]
    %v30 = vld [vmem:[%s1] sm:$0xff]
    %v31 = vld [vmem:[%s1 + $0x8] sm:$0xff]
    %v32 = vld [vmem:[%s1 + $0x10] sm:$0xff]
    %v33 = vld [vmem:[%s1 + $0x18] sm:$0xff]
    %v34 = vld [vmem:[%s1 + $0x20] sm:$0xff]
    %v35 = vld [vmem:[%s1 + $0x28] sm:$0xff]
    %v36 = vld [vmem:[%s1 + $0x30] sm:$0xff]
    %v37 = vld [vmem:[%s1 + $0x38] sm:$0xff]
    %v38 = vld [vmem:[%s1 + $0x40] sm:$0xff]
    %v39 = vld [vmem:[%s1 + $0x48] sm:$0xff]
    %v40 = vld [vmem:[%s1 + $0x50] sm:$0xff]
    %v41 = vld [vmem:[%s1 + $0x58] sm:$0xff]
    %v42 = vld [vmem:[%s1 + $0x60] sm:$0xff]
    %v43 = vld [vmem:[%s1 + $0x68] sm:$0xff]
    %v44 = vld [vmem:[%s1 + $0x70] sm:$0xff]
    %v45 = vld [vmem:[%s1 + $0x78] sm:$0xff]
    %v46 = vld [vmem:[%s1 + $0x80] sm:$0xff]
    %v47 = vld [vmem:[%s1 + $0x88] sm:$0xff]
    %v48 = vld [vmem:[%s1 + $0x90] sm:$0xff]
    %v49 = vld [vmem:[%s1 + $0x98] sm:$0xff]
    %v50 = vld [vmem:[%s1 + $0xa0] sm:$0xff]
    %v51 = vld [vmem:[%s1 + $0xa8] sm:$0xff]
    %v52 = vld [vmem:[%s1 + $0xb0] sm:$0xff]
    %v53 = vld [vmem:[%s1 + $0xb8] sm:$0xff]
    %v54 = vld [vmem:[%s1 + $0xc0] sm:$0xff]
    %v55 = vld [vmem:[%s1 + $0xc8] sm:$0xff]
    %v56 = vld [vmem:[%s1 + $0xd0] sm:$0xff]
    %v57 = vld [vmem:[%s1 + $0xd8] sm:$0xff]
    %v58 = vld [vmem:[%s1 + $0xe0] sm:$0xff]
    %v59 = vld [vmem:[%s1 + $0xe8] sm:$0xff]
    %v60 = vld [vmem:[%s1 + $0xf0] sm:$0xff]
    %v61 = vld [vmem:[%s1 + $0xf8] sm:$0xff]
    %v62 = vld [vmem:[%s1 + $0x100] sm:$0xff]
    %v63 = vld [vmem:[%s1 + $0x108] sm:$0xff]
    %v64 = vld [vmem:[%s1 + $0x110] sm:$0xff]
    %v65 = vld [vmem:[%s1 + $0x118] sm:$0xff]
    %v66 = vld [vmem:[%s1 + $0x120] sm:$0xff]
    %v67 = vld [vmem:[%s1 + $0x128] sm:$0xff]
    %v68 = vld [vmem:[%s1 + $0x130] sm:$0xff]
    %v69 = vld [vmem:[%s1 + $0x138] sm:$0xff]
    %v70 = vld [vmem:[%s1 + $0x140] sm:$0xff]
    %v71 = vld [vmem:[%s1 + $0x148] sm:$0xff]
    %v72 = vld [vmem:[%s1 + $0x150] sm:$0xff]
    %v73 = vld [vmem:[%s1 + $0x158] sm:$0xff]
    %v74 = vld [vmem:[%s1 + $0x160] sm:$0xff]
    %v75 = vld [vmem:[%s1 + $0x168] sm:$0xff]
    %v76 = vld [vmem:[%s1 + $0x170] sm:$0xff]
    %v77 = vld [vmem:[%s1 + $0x178] sm:$0xff]
    %v78 = vld [vmem:[%s1 + $0x180] sm:$0xff]
    %v79 = vld [vmem:[%s1 + $0x188] sm:$0xff]
    %v80 = vld [vmem:[%s1 + $0x190] sm:$0xff]
    %v81 = vld [vmem:[%s1 + $0x198] sm:$0xff]
    %v82 = vld [vmem:[%s1 + $0x1a0] sm:$0xff]
    %v83 = vld [vmem:[%s1 + $0x1a8] sm:$0xff]
    %v84 = vld [vmem:[%s1 + $0x1b0] sm:$0xff]
    %v85 = vld [vmem:[%s1 + $0x1b8] sm:$0xff]
    %v86 = vld [vmem:[%s1 + $0x1c0] sm:$0xff]
    %v87 = vld [vmem:[%s1 + $0x1c8] sm:$0xff]
    %v88 = vld [vmem:[%s1 + $0x1d0] sm:$0xff]
    %v89 = vld [vmem:[%s1 + $0x1d8] sm:$0xff]
    %v90 = vld [vmem:[%s1 + $0x1e0] sm:$0xff]
    %v91 = vld [vmem:[%s1 + $0x1e8] sm:$0xff]
    %v92 = vld [vmem:[%s1 + $0x1f0] sm:$0xff]
    %v93 = vld [vmem:[%s1 + $0x1f8] sm:$0xff]
    %v94 = vld [vmem:[%s1 + $0x200] sm:$0xff]
    %v95 = vld [vmem:[%s1 + $0x208] sm:$0xff]
    %v96 = vld [vmem:[%s1 + $0x210] sm:$0xff]
    %v97 = vld [vmem:[%s1 + $0x218] sm:$0xff]
    %v98 = vld [vmem:[%s1 + $0x220] sm:$0xff]
    %v99 = vld [vmem:[%s1 + $0x228] sm:$0xff]
    %v100 = vld [vmem:[%s1 + $0x230] sm:$0xff]
    %v101 = vld [vmem:[%s1 + $0x238] sm:$0xff]
    %v102 = vld [vmem:[%s1 + $0x240] sm:$0xff]
    %v103 = vld [vmem:[%s1 + $0x248] sm:$0xff]
    %v104 = vld [vmem:[%s1 + $0x250] sm:$0xff]
    %v105 = vld [vmem:[%s1 + $0x258] sm:$0xff]
    %v106 = vld [vmem:[%s1 + $0x260] sm:$0xff]
    %v107 = vld [vmem:[%s1 + $0x268] sm:$0xff]
    %v108 = vld [vmem:[%s1 + $0x270] sm:$0xff]
    %v109 = vld [vmem:[%s1 + $0x278] sm:$0xff]
    %v110 = vld [vmem:[%s1 + $0x280] sm:$0xff]
    %v111 = vld [vmem:[%s1 + $0x288] sm:$0xff]
    %v112 = vld [vmem:[%s1 + $0x290] sm:$0xff]
    %v113 = vld [vmem:[%s1 + $0x298] sm:$0xff]
    %v114 = vld [vmem:[%s1 + $0x2a0] sm:$0xff]
    %v115 = vld [vmem:[%s1 + $0x2a8] sm:$0xff]
    %v116 = vld [vmem:[%s1 + $0x2b0] sm:$0xff]
    %v117 = vld [vmem:[%s1 + $0x2b8] sm:$0xff]
    %v118 = vld [vmem:[%s1 + $0x2c0] sm:$0xff]
    %v119 = vld [vmem:[%s1 + $0x2c8] sm:$0xff]
    %v120 = vld [vmem:[%s1 + $0x2d0] sm:$0xff]
    %v121 = vld [vmem:[%s1 + $0x2d8] sm:$0xff]
    %v122 = vld [vmem:[%s1 + $0x2e0] sm:$0xff]
    %v123 = vld [vmem:[%s1 + $0x2e8] sm:$0xff]
    %v124 = vld [vmem:[%s1 + $0x2f0] sm:$0xff]
    %v125 = vld [vmem:[%s1 + $0x2f8] sm:$0xff]
    %v126 = vld [vmem:[%s1 + $0x300] sm:$0xff]
    %v127 = vld [vmem:[%s1 + $0x308] sm:$0xff]
    %v128 = vld [vmem:[%s1 + $0x310] sm:$0xff]
    %v129 = vld [vmem:[%s1 + $0x318] sm:$0xff]
    %v130 = vld [vmem:[%s1 + $0x320] sm:$0xff]
    %v131 = vld [vmem:[%s1 + $0x328] sm:$0xff]
    %v132 = vld [vmem:[%s1 + $0x330] sm:$0xff]
    %v133 = vld [vmem:[%s1 + $0x338] sm:$0xff]
    %v134 = vld [vmem:[%s1 + $0x340] sm:$0xff]
    %v135 = vld [vmem:[%s1 + $0x348] sm:$0xff]
    %v136 = vld [vmem:[%s1 + $0x350] sm:$0xff]
    %v137 = vld [vmem:[%s1 + $0x358] sm:$0xff]
    %v138 = vld [vmem:[%s1 + $0x360] sm:$0xff]
    %v139 = vld [vmem:[%s1 + $0x368] sm:$0xff]
    %v140 = vld [vmem:[%s1 + $0x370] sm:$0xff]
    %v141 = vld [vmem:[%s1 + $0x378] sm:$0xff]
    %v142 = vld [vmem:[%s1 + $0x380] sm:$0xff]
    %v143 = vld [vmem:[%s1 + $0x388] sm:$0xff]
    %v144 = vld [vmem:[%s1 + $0x390] sm:$0xff]
    %v145 = vld [vmem:[%s1 + $0x398] sm:$0xff]
    %v146 = vld [vmem:[%s1 + $0x3a0] sm:$0xff]
    %v147 = vld [vmem:[%s1 + $0x3a8] sm:$0xff]
    %v148 = vld [vmem:[%s1 + $0x3b0] sm:$0xff]
    %v149 = vld [vmem:[%s1 + $0x3b8] sm:$0xff]
    %v150 = vld [vmem:[%s1 + $0x3c0] sm:$0xff]
    %v151 = vld [vmem:[%s1 + $0x3c8] sm:$0xff]
    %v152 = vld [vmem:[%s1 + $0x3d0] sm:$0xff]
    %v153 = vld [vmem:[%s1 + $0x3d8] sm:$0xff]
    %v154 = vld [vmem:[%s1 + $0x3e0] sm:$0xff]
    %v155 = vld [vmem:[%s1 + $0x3e8] sm:$0xff]
    %v156 = vld [vmem:[%s1 + $0x3f0] sm:$0xff]
    %v157 = vld [vmem:[%s1 + $0x3f8] sm:$0xff]
    %v160 = vcombine.high %v28, %v28
    %v162 = vunpack.c.l.s4 1983009808
    %v163 = vunpack.c.0.s8 %v162
    %v164 = vlaneseq
    %v165 = vshrl.u32 %v164, 7
    %v166 = vsub.s32 %v163, %v165
    %v167 = vrot.slane %v28, %v166
    %v169 = vunpack.c.l.s4 1983009808
    %v170 = vunpack.c.0.s8 %v169
    %v171 = vlaneseq
    %v172 = vshrl.u32 %v171, 7
    %v173 = vsub.s32 %v170, %v172
    %v174 = vrot.slane %v160, %v173
    %v175 = vcombine.high %v167, %v167
    %v176 = vcombine.high %v174, %v174
    %v177 = vcombine.high %v29, %v29
    %v179 = vunpack.c.l.s4 1983009808
    %v180 = vunpack.c.0.s8 %v179
    %v181 = vlaneseq
    %v182 = vshrl.u32 %v181, 7
    %v183 = vsub.s32 %v180, %v182
    %v184 = vrot.slane %v29, %v183
    %v186 = vunpack.c.l.s4 1983009808
    %v187 = vunpack.c.0.s8 %v186
    %v188 = vlaneseq
    %v189 = vshrl.u32 %v188, 7
    %v190 = vsub.s32 %v187, %v189
    %v191 = vrot.slane %v177, %v190
    %v192 = vcombine.high %v184, %v184
    %v193 = vcombine.high %v191, %v191
    %202 = vmatprep.subr.mxu0 0.0
    %203 = vmatpush1.msra.mxu0 %v30
    %204 = vmatprep.subr.mxu0 0.0
    %205 = vmatpush1.msra.mxu0 %v31
    %206 = vmatprep.subr.mxu0 0.0
    %207 = vmatpush1.msra.mxu0 %v32
    %208 = vmatprep.subr.mxu0 0.0
    %209 = vmatpush1.msra.mxu0 %v33
    %210 = vmatprep.subr.mxu0 0.0
    %211 = vmatpush1.msra.mxu0 %v34
    %212 = vmatprep.subr.mxu0 0.0
    %213 = vmatpush1.msra.mxu0 %v35
    %214 = vmatprep.subr.mxu0 0.0
    %215 = vmatpush1.msra.mxu0 %v36
    %216 = vmatprep.subr.mxu0 0.0
    %217 = vmatpush1.msra.mxu0 %v37
    %218 = vmatprep.subr.mxu0 0.0
    %219 = vmatpush1.msra.mxu0 %v38
    %220 = vmatprep.subr.mxu0 0.0
    %221 = vmatpush1.msra.mxu0 %v39
    %222 = vmatprep.subr.mxu0 0.0
    %223 = vmatpush1.msra.mxu0 %v40
    %224 = vmatprep.subr.mxu0 0.0
    %225 = vmatpush1.msra.mxu0 %v41
    %226 = vmatprep.subr.mxu0 0.0
    %227 = vmatpush1.msra.mxu0 %v42
    %228 = vmatprep.subr.mxu0 0.0
    %229 = vmatpush1.msra.mxu0 %v43
    %230 = vmatprep.subr.mxu0 0.0
    %231 = vmatpush1.msra.mxu0 %v44
    %232 = vmatprep.subr.mxu0 0.0
    %233 = vmatpush1.msra.mxu0 %v45
    %234 = vmatprep.subr.mxu0 0.0
    %235 = vmatpush1.msra.mxu0 %v46
    %236 = vmatprep.subr.mxu0 0.0
    %237 = vmatpush1.msra.mxu0 %v47
    %238 = vmatprep.subr.mxu0 0.0
    %239 = vmatpush1.msra.mxu0 %v48
    %240 = vmatprep.subr.mxu0 0.0
    %241 = vmatpush1.msra.mxu0 %v49
    %242 = vmatprep.subr.mxu0 0.0
    %243 = vmatpush1.msra.mxu0 %v50
    %244 = vmatprep.subr.mxu0 0.0
    %245 = vmatpush1.msra.mxu0 %v51
    %246 = vmatprep.subr.mxu0 0.0
    %247 = vmatpush1.msra.mxu0 %v52
    %248 = vmatprep.subr.mxu0 0.0
    %249 = vmatpush1.msra.mxu0 %v53
    %250 = vmatprep.subr.mxu0 0.0
    %251 = vmatpush1.msra.mxu0 %v54
    %252 = vmatprep.subr.mxu0 0.0
    %253 = vmatpush1.msra.mxu0 %v55
    %254 = vmatprep.subr.mxu0 0.0
    %255 = vmatpush1.msra.mxu0 %v56
    %256 = vmatprep.subr.mxu0 0.0
    %257 = vmatpush1.msra.mxu0 %v57
    %258 = vmatprep.subr.mxu0 0.0
    %259 = vmatpush1.msra.mxu0 %v58
    %260 = vmatprep.subr.mxu0 0.0
    %261 = vmatpush1.msra.mxu0 %v59
    %262 = vmatprep.subr.mxu0 0.0
    %263 = vmatpush1.msra.mxu0 %v60
    %264 = vmatprep.subr.mxu0 0.0
    %265 = vmatpush1.msra.mxu0 %v61
    %266 = vmatprep.mubr.f32.mxu0 %v175
    %267 = vmatmul.mubr.f32.gmra.mrb[0].mxu0 %v167
    %v268 = vpop.f32.mrb[0].mxu0
    %v269 = vadd.f32 0.0, %v268
    %v270 = vpop.f32.mrb[0].mxu0
    %271 = vdwg.mxu0
    %272 = vmatprep.subr.mxu0 0.0
    %273 = vmatpush1.msra.mxu0 %v62
    %274 = vmatprep.subr.mxu0 0.0
    %275 = vmatpush1.msra.mxu0 %v63
    %276 = vmatprep.subr.mxu0 0.0
    %277 = vmatpush1.msra.mxu0 %v64
    %278 = vmatprep.subr.mxu0 0.0
    %279 = vmatpush1.msra.mxu0 %v65
    %280 = vmatprep.subr.mxu0 0.0
    %281 = vmatpush1.msra.mxu0 %v66
    %282 = vmatprep.subr.mxu0 0.0
    %283 = vmatpush1.msra.mxu0 %v67
    %284 = vmatprep.subr.mxu0 0.0
    %285 = vmatpush1.msra.mxu0 %v68
    %286 = vmatprep.subr.mxu0 0.0
    %287 = vmatpush1.msra.mxu0 %v69
    %288 = vmatprep.subr.mxu0 0.0
    %289 = vmatpush1.msra.mxu0 %v70
    %290 = vmatprep.subr.mxu0 0.0
    %291 = vmatpush1.msra.mxu0 %v71
    %292 = vmatprep.subr.mxu0 0.0
    %293 = vmatpush1.msra.mxu0 %v72
    %294 = vmatprep.subr.mxu0 0.0
    %295 = vmatpush1.msra.mxu0 %v73
    %296 = vmatprep.subr.mxu0 0.0
    %297 = vmatpush1.msra.mxu0 %v74
    %298 = vmatprep.subr.mxu0 0.0
    %299 = vmatpush1.msra.mxu0 %v75
    %300 = vmatprep.subr.mxu0 0.0
    %301 = vmatpush1.msra.mxu0 %v76
    %302 = vmatprep.subr.mxu0 0.0
    %303 = vmatpush1.msra.mxu0 %v77
    %304 = vmatprep.subr.mxu0 0.0
    %305 = vmatpush1.msra.mxu0 %v78
    %306 = vmatprep.subr.mxu0 0.0
    %307 = vmatpush1.msra.mxu0 %v79
    %308 = vmatprep.subr.mxu0 0.0
    %309 = vmatpush1.msra.mxu0 %v80
    %310 = vmatprep.subr.mxu0 0.0
    %311 = vmatpush1.msra.mxu0 %v81
    %312 = vmatprep.subr.mxu0 0.0
    %313 = vmatpush1.msra.mxu0 %v82
    %314 = vmatprep.subr.mxu0 0.0
    %315 = vmatpush1.msra.mxu0 %v83
    %316 = vmatprep.subr.mxu0 0.0
    %317 = vmatpush1.msra.mxu0 %v84
    %318 = vmatprep.subr.mxu0 0.0
    %319 = vmatpush1.msra.mxu0 %v85
    %320 = vmatprep.subr.mxu0 0.0
    %321 = vmatpush1.msra.mxu0 %v86
    %322 = vmatprep.subr.mxu0 0.0
    %323 = vmatpush1.msra.mxu0 %v87
    %324 = vmatprep.subr.mxu0 0.0
    %325 = vmatpush1.msra.mxu0 %v88
    %326 = vmatprep.subr.mxu0 0.0
    %327 = vmatpush1.msra.mxu0 %v89
    %328 = vmatprep.subr.mxu0 0.0
    %329 = vmatpush1.msra.mxu0 %v90
    %330 = vmatprep.subr.mxu0 0.0
    %331 = vmatpush1.msra.mxu0 %v91
    %332 = vmatprep.subr.mxu0 0.0
    %333 = vmatpush1.msra.mxu0 %v92
    %334 = vmatprep.subr.mxu0 0.0
    %335 = vmatpush1.msra.mxu0 %v93
    %336 = vmatprep.mubr.f32.mxu0 %v176
    %337 = vmatmul.mubr.f32.gmra.mrb[0].mxu0 %v174
    %v338 = vpop.f32.mrb[0].mxu0
    %v339 = vadd.f32 %v269, %v338
    %v340 = vpop.f32.mrb[0].mxu0
    %341 = vdwg.mxu0
    %342 = vmatprep.subr.mxu0 0.0
    %343 = vmatpush1.msra.mxu0 %v94
    %344 = vmatprep.subr.mxu0 0.0
    %345 = vmatpush1.msra.mxu0 %v95
    %346 = vmatprep.subr.mxu0 0.0
    %347 = vmatpush1.msra.mxu0 %v96
    %348 = vmatprep.subr.mxu0 0.0
    %349 = vmatpush1.msra.mxu0 %v97
    %350 = vmatprep.subr.mxu0 0.0
    %351 = vmatpush1.msra.mxu0 %v98
    %352 = vmatprep.subr.mxu0 0.0
    %353 = vmatpush1.msra.mxu0 %v99
    %354 = vmatprep.subr.mxu0 0.0
    %355 = vmatpush1.msra.mxu0 %v100
    %356 = vmatprep.subr.mxu0 0.0
    %357 = vmatpush1.msra.mxu0 %v101
    %358 = vmatprep.subr.mxu0 0.0
    %359 = vmatpush1.msra.mxu0 %v102
    %360 = vmatprep.subr.mxu0 0.0
    %361 = vmatpush1.msra.mxu0 %v103
    %362 = vmatprep.subr.mxu0 0.0
    %363 = vmatpush1.msra.mxu0 %v104
    %364 = vmatprep.subr.mxu0 0.0
    %365 = vmatpush1.msra.mxu0 %v105
    %366 = vmatprep.subr.mxu0 0.0
    %367 = vmatpush1.msra.mxu0 %v106
    %368 = vmatprep.subr.mxu0 0.0
    %369 = vmatpush1.msra.mxu0 %v107
    %370 = vmatprep.subr.mxu0 0.0
    %371 = vmatpush1.msra.mxu0 %v108
    %372 = vmatprep.subr.mxu0 0.0
    %373 = vmatpush1.msra.mxu0 %v109
    %374 = vmatprep.subr.mxu0 0.0
    %375 = vmatpush1.msra.mxu0 %v110
    %376 = vmatprep.subr.mxu0 0.0
    %377 = vmatpush1.msra.mxu0 %v111
    %378 = vmatprep.subr.mxu0 0.0
    %379 = vmatpush1.msra.mxu0 %v112
    %380 = vmatprep.subr.mxu0 0.0
    %381 = vmatpush1.msra.mxu0 %v113
    %382 = vmatprep.subr.mxu0 0.0
    %383 = vmatpush1.msra.mxu0 %v114
    %384 = vmatprep.subr.mxu0 0.0
    %385 = vmatpush1.msra.mxu0 %v115
    %386 = vmatprep.subr.mxu0 0.0
    %387 = vmatpush1.msra.mxu0 %v116
    %388 = vmatprep.subr.mxu0 0.0
    %389 = vmatpush1.msra.mxu0 %v117
    %390 = vmatprep.subr.mxu0 0.0
    %391 = vmatpush1.msra.mxu0 %v118
    %392 = vmatprep.subr.mxu0 0.0
    %393 = vmatpush1.msra.mxu0 %v119
    %394 = vmatprep.subr.mxu0 0.0
    %395 = vmatpush1.msra.mxu0 %v120
    %396 = vmatprep.subr.mxu0 0.0
    %397 = vmatpush1.msra.mxu0 %v121
    %398 = vmatprep.subr.mxu0 0.0
    %399 = vmatpush1.msra.mxu0 %v122
    %400 = vmatprep.subr.mxu0 0.0
    %401 = vmatpush1.msra.mxu0 %v123
    %402 = vmatprep.subr.mxu0 0.0
    %403 = vmatpush1.msra.mxu0 %v124
    %404 = vmatprep.subr.mxu0 0.0
    %405 = vmatpush1.msra.mxu0 %v125
    %406 = vmatprep.mubr.f32.mxu0 %v192
    %407 = vmatmul.mubr.f32.gmra.mrb[0].mxu0 %v184
    %v408 = vpop.f32.mrb[0].mxu0
    %v409 = vadd.f32 %v339, %v408
    %v410 = vpop.f32.mrb[0].mxu0
    %411 = vdwg.mxu0
    %412 = vmatprep.subr.mxu0 0.0
    %413 = vmatpush1.msra.mxu0 %v126
    %414 = vmatprep.subr.mxu0 0.0
    %415 = vmatpush1.msra.mxu0 %v127
    %416 = vmatprep.subr.mxu0 0.0
    %417 = vmatpush1.msra.mxu0 %v128
    %418 = vmatprep.subr.mxu0 0.0
    %419 = vmatpush1.msra.mxu0 %v129
    %420 = vmatprep.subr.mxu0 0.0
    %421 = vmatpush1.msra.mxu0 %v130
    %422 = vmatprep.subr.mxu0 0.0
    %423 = vmatpush1.msra.mxu0 %v131
    %424 = vmatprep.subr.mxu0 0.0
    %425 = vmatpush1.msra.mxu0 %v132
    %426 = vmatprep.subr.mxu0 0.0
    %427 = vmatpush1.msra.mxu0 %v133
    %428 = vmatprep.subr.mxu0 0.0
    %429 = vmatpush1.msra.mxu0 %v134
    %430 = vmatprep.subr.mxu0 0.0
    %431 = vmatpush1.msra.mxu0 %v135
    %432 = vmatprep.subr.mxu0 0.0
    %433 = vmatpush1.msra.mxu0 %v136
    %434 = vmatprep.subr.mxu0 0.0
    %435 = vmatpush1.msra.mxu0 %v137
    %436 = vmatprep.subr.mxu0 0.0
    %437 = vmatpush1.msra.mxu0 %v138
    %438 = vmatprep.subr.mxu0 0.0
    %439 = vmatpush1.msra.mxu0 %v139
    %440 = vmatprep.subr.mxu0 0.0
    %441 = vmatpush1.msra.mxu0 %v140
    %442 = vmatprep.subr.mxu0 0.0
    %443 = vmatpush1.msra.mxu0 %v141
    %444 = vmatprep.subr.mxu0 0.0
    %445 = vmatpush1.msra.mxu0 %v142
    %446 = vmatprep.subr.mxu0 0.0
    %447 = vmatpush1.msra.mxu0 %v143
    %448 = vmatprep.subr.mxu0 0.0
    %449 = vmatpush1.msra.mxu0 %v144
    %450 = vmatprep.subr.mxu0 0.0
    %451 = vmatpush1.msra.mxu0 %v145
    %452 = vmatprep.subr.mxu0 0.0
    %453 = vmatpush1.msra.mxu0 %v146
    %454 = vmatprep.subr.mxu0 0.0
    %455 = vmatpush1.msra.mxu0 %v147
    %456 = vmatprep.subr.mxu0 0.0
    %457 = vmatpush1.msra.mxu0 %v148
    %458 = vmatprep.subr.mxu0 0.0
    %459 = vmatpush1.msra.mxu0 %v149
    %460 = vmatprep.subr.mxu0 0.0
    %461 = vmatpush1.msra.mxu0 %v150
    %462 = vmatprep.subr.mxu0 0.0
    %463 = vmatpush1.msra.mxu0 %v151
    %464 = vmatprep.subr.mxu0 0.0
    %465 = vmatpush1.msra.mxu0 %v152
    %466 = vmatprep.subr.mxu0 0.0
    %467 = vmatpush1.msra.mxu0 %v153
    %468 = vmatprep.subr.mxu0 0.0
    %469 = vmatpush1.msra.mxu0 %v154
    %470 = vmatprep.subr.mxu0 0.0
    %471 = vmatpush1.msra.mxu0 %v155
    %472 = vmatprep.subr.mxu0 0.0
    %473 = vmatpush1.msra.mxu0 %v156
    %474 = vmatprep.subr.mxu0 0.0
    %475 = vmatpush1.msra.mxu0 %v157
    %476 = vmatprep.mubr.f32.mxu0 %v193
    %477 = vmatmul.mubr.f32.gmra.mrb[0].mxu0 %v191
    %v478 = vpop.f32.mrb[0].mxu0
    %v479 = vadd.f32 %v409, %v478
    %v480 = vpop.f32.mrb[0].mxu0
    %481 = vdwg.mxu0
    %v482 = vadd.f32 %v27, %v479
    %vm483 = vcmask 254976
    %484 = vst.msk [vmem:[#allocation2] sm:$0x3] %vm483, %v482
    // Predicated region
    $region26: #{tpu_custom_call.1} parent=1 // pred_check
      %p485 = pneg %p21
    $region27: #{tpu_custom_call.1} parent=1 // pred_check_branch
      %487 = sbr.rel (%p485) target = $region29
    $region28: #{tpu_custom_call.1} parent=1 // pred_region
      %v488 = vld [vmem:[#allocation2] sm:$0x3]
      %v489 = vld [vmem:[%s2] sm:$0x1]
      %v491 = vlaneseq
      %v492 = vshrl.u32 %v491, 7
      %v493 = vsub.s32 0, %v492
      %v494 = vrot.slane %v489, %v493
      %v496 = vadd.f32 %v488, %v494
      %v497 = vld [vmem:[%s3] sm:$0xff]
      %v498 = vld [vmem:[%s3 + $0x8] sm:$0xff]
      %v499 = vld [vmem:[%s3 + $0x10] sm:$0xff]
      %v500 = vld [vmem:[%s3 + $0x18] sm:$0xff]
      %v501 = vld [vmem:[%s4] sm:$0x1]
      %v503 = vlaneseq
      %v504 = vshrl.u32 %v503, 7
      %v505 = vsub.s32 0, %v504
      %v506 = vrot.slane %v501, %v505
      %vm508 = vcmask 261120
      %v510 = vsel %vm508, %v496, 0
      %512 = vmatprep.subr.mxu0 0.0
      %513 = vmatpush1.msra.mxu0 %v497
      %514 = vmatprep.subr.mxu0 0.0
      %515 = vmatpush1.msra.mxu0 %v498
      %516 = vmatprep.subr.mxu0 0.0
      %517 = vmatpush1.msra.mxu0 %v499
      %518 = vmatprep.subr.mxu0 0.0
      %519 = vmatpush1.msra.mxu0 %v500
      %520 = vmatprep.subr.mxu0 0.0
      %521 = vmatpush1.msra.mxu0 0.0
      %522 = vmatprep.subr.mxu0 0.0
      %523 = vmatpush1.msra.mxu0 0.0
      %524 = vmatprep.subr.mxu0 0.0
      %525 = vmatpush1.msra.mxu0 0.0
      %526 = vmatprep.subr.mxu0 0.0
      %527 = vmatpush1.msra.mxu0 0.0
      %528 = vmatprep.subr.mxu0 0.0
      %529 = vmatpush1.msra.mxu0 0.0
      %530 = vmatprep.subr.mxu0 0.0
      %531 = vmatpush1.msra.mxu0 0.0
      %532 = vmatprep.subr.mxu0 0.0
      %533 = vmatpush1.msra.mxu0 0.0
      %534 = vmatprep.subr.mxu0 0.0
      %535 = vmatpush1.msra.mxu0 0.0
      %536 = vmatprep.subr.mxu0 0.0
      %537 = vmatpush1.msra.mxu0 0.0
      %538 = vmatprep.subr.mxu0 0.0
      %539 = vmatpush1.msra.mxu0 0.0
      %540 = vmatprep.subr.mxu0 0.0
      %541 = vmatpush1.msra.mxu0 0.0
      %542 = vmatprep.subr.mxu0 0.0
      %543 = vmatpush1.msra.mxu0 0.0
      %544 = vmatprep.subr.mxu0 0.0
      %545 = vmatpush1.msra.mxu0 0.0
      %546 = vmatprep.subr.mxu0 0.0
      %547 = vmatpush1.msra.mxu0 0.0
      %548 = vmatprep.subr.mxu0 0.0
      %549 = vmatpush1.msra.mxu0 0.0
      %550 = vmatprep.subr.mxu0 0.0
      %551 = vmatpush1.msra.mxu0 0.0
      %552 = vmatprep.subr.mxu0 0.0
      %553 = vmatpush1.msra.mxu0 0.0
      %554 = vmatprep.subr.mxu0 0.0
      %555 = vmatpush1.msra.mxu0 0.0
      %556 = vmatprep.subr.mxu0 0.0
      %557 = vmatpush1.msra.mxu0 0.0
      %558 = vmatprep.subr.mxu0 0.0
      %559 = vmatpush1.msra.mxu0 0.0
      %560 = vmatprep.subr.mxu0 0.0
      %561 = vmatpush1.msra.mxu0 0.0
      %562 = vmatprep.subr.mxu0 0.0
      %563 = vmatpush1.msra.mxu0 0.0
      %564 = vmatprep.subr.mxu0 0.0
      %565 = vmatpush1.msra.mxu0 0.0
      %566 = vmatprep.subr.mxu0 0.0
      %567 = vmatpush1.msra.mxu0 0.0
      %568 = vmatprep.subr.mxu0 0.0
      %569 = vmatpush1.msra.mxu0 0.0
      %570 = vmatprep.subr.mxu0 0.0
      %571 = vmatpush1.msra.mxu0 0.0
      %572 = vmatprep.subr.mxu0 0.0
      %573 = vmatpush1.msra.mxu0 0.0
      %574 = vmatprep.subr.mxu0 0.0
      %575 = vmatpush1.msra.mxu0 0.0
      %576 = vmatprep.mubr.f32.mxu0 0.0
      %577 = vmatmul.mubr.f32.gmra.mrb[0].mxu0 %v510
      %v578 = vpop.f32.mrb[0].mxu0
      %v579 = vadd.f32 %v506, %v578
      %v580 = vpop.f32.mrb[0].mxu0
      %581 = vdwg.mxu0
      %582 = vst [vmem:[#allocation3] sm:$0x3] %v579
    $region29: #{tpu_custom_call.1} parent=1 // pred_fallthru
      _
    // Predicated region
    $region30: #{tpu_custom_call.1} parent=1 // pred_check
      _
    $region31: #{tpu_custom_call.1} parent=1 // pred_check_branch
      %584 = sbr.rel (0) target = $region33
    $region32: #{tpu_custom_call.1} parent=1 // pred_region
      %s586 = ssub.s32 32, 32
      %587 = vsyncadd [#allocation4], %s586
      %s589 = sshll.u32 [#allocation3], 4
      %s590 = int_to_ptr.vmem [resolvable:$true] %s589
      %592 = dma.vmem_to_hbm [thread:$0]  %s590, 32, %s5, [#allocation4]
    $region33: #{tpu_custom_call.1} parent=1 // pred_fallthru
      _
    // Predicated region
    $region34: #{tpu_custom_call.1} parent=1 // pred_check
      _
    $region35: #{tpu_custom_call.1} parent=1 // pred_check_branch
      %594 = sbr.rel (0) target = $region37
    $region36: #{tpu_custom_call.1} parent=1 // pred_region
      %595 = dma.done [#allocation4], 32
    $region37: #{tpu_custom_call.1} parent=1 // pred_fallthru
      _
    %596 = vsyncpa [#allocation4], 1

</llo_original>
